<compile_context>
chip_gen: v7x
topology: tpu7x:2x2x1
jax: 0.10.0
libtpu: 0.0.40
codegen_flags: <defaults>
</compile_context>

<pallas_src>
from collections import OrderedDict
import logging

import jax
import jax.numpy as jnp
from jax import lax
from jax.experimental import pallas as pl
from jax.experimental.pallas import tpu as pltpu


_LANE = 128
_SUBLANE = 8
_TARGET_BLOCK_BYTES = 4 * 1024 * 1024   # ~4 MiB activation block per grid step


# ----------------------------------------------------------------------------
# Pallas kernel
# ----------------------------------------------------------------------------
def _make_distill_kernel(c_dim, tile_r, chunk_r, tiles_per_split, s128, needs_mask):
    """Build the fused distillation-loss kernel for a fixed static config.

    Refs seen by the kernel (leading size-1 dims squeezed via BlockSpec):
      wd_ref : (C, C)              f32  SMEM   fused (W_s - W_t)
      x_ref  : (C, TILE_R, 128)    any  VMEM   lane/sublane-dense pixel tile
      out_ref: (2, CHUNK_R, 128)   f32  VMEM   resident per-(split,batch) partials
               row 0: running sum of diff^2, row 1: running sum of |diff|
    """
    n_chunks = tile_r // chunk_r

    def kernel(wd_ref, x_ref, out_ref):
        t = pl.program_id(2)

        @pl.when(t == 0)
        def _init():
            out_ref[...] = jnp.zeros_like(out_ref)

        if needs_mask:
            sp = pl.program_id(0)
            tile_row_base = (sp * tiles_per_split + t) * tile_r

        def chunk_body(i, carry):
            sq, ab = carry
            r0 = i * chunk_r
            if chunk_r == _SUBLANE:
                r0 = pl.multiple_of(r0, _SUBLANE)
            # One (chunk_r, 128) slab per input channel; upcast in-kernel.
            xs = [x_ref[ci, pl.ds(r0, chunk_r), :].astype(jnp.float32)
                  for ci in range(c_dim)]
            if needs_mask:
                rows = lax.broadcasted_iota(jnp.int32, (chunk_r, _LANE), 0)
                valid = (tile_row_base + i * chunk_r + rows) < s128
            # diff[c_out] = sum_{c_in} x[c_in] * Wd[c_in, c_out]:
            # C^2 scalar*vreg FMAs on the VPU (scalars from SMEM).
            for co in range(c_dim):
                d = xs[0] * wd_ref[0, co]
                for ci in range(1, c_dim):
                    d = d + xs[ci] * wd_ref[ci, co]
                dd = d * d
                da = jnp.abs(d)
                if needs_mask:
                    # Tail-tile rows past s128 may hold garbage from a
                    # partial block DMA; select (not multiply) them to 0.
                    dd = jnp.where(valid, dd, 0.0)
                    da = jnp.where(valid, da, 0.0)
                sq = sq + dd
                ab = ab + da
            return sq, ab

        zeros = jnp.zeros((chunk_r, _LANE), jnp.float32)
        sq, ab = lax.fori_loop(0, n_chunks, chunk_body, (zeros, zeros))

        # One tiny (2 vreg) RMW per grid step into the resident accumulator.
        out_ref[0] += sq
        out_ref[1] += ab

    return kernel


# ----------------------------------------------------------------------------
# Pallas wrapper
# ----------------------------------------------------------------------------
def distill_losses_pallas(imgs, w_student, w_teacher):
    """imgs: (N, C, H, W) NCHW. Returns (mse_loss, l1_loss) scalars."""
    n, c, h, w = imgs.shape
    s = h * w

    # Pure view reshape -- no transpose, no dtype copy, no extra HBM pass.
    x3 = imgs.reshape(n, c, s)
    if s % _LANE != 0:
        # TODO(synk): fold this lane-tail pad into in-kernel lane masking to
        # avoid the extra HBM pass when H*W is not a multiple of 128.
        x3 = jnp.pad(x3, ((0, 0), (0, 0), (0, _LANE - s % _LANE)))
    s128 = x3.shape[-1] // _LANE
    x4 = x3.reshape(n, c, s128, _LANE)          # pixels: (sublane rows, 128 lanes)

    # Tile size derived from a ~4 MiB activation-block budget (amortizes the
    # ~0.35 us/step overhead; 2x-buffered it stays well under every
    # generation's VMEM, including v7x's 64 MiB).
    itemsize = jnp.dtype(imgs.dtype).itemsize
    bytes_per_row = c * _LANE * itemsize
    tile_r = max(1, _TARGET_BLOCK_BYTES // bytes_per_row)
    if s128 >= _SUBLANE:
        tile_r = min(tile_r, s128)
        tile_r = max(_SUBLANE, (tile_r // _SUBLANE) * _SUBLANE)
    else:
        tile_r = s128                           # block equals full dim (allowed)
    chunk_r = min(_SUBLANE, tile_r)

    num_tiles = (s128 + tile_r - 1) // tile_r
    needs_mask = (num_tiles * tile_r != s128)
    # v7x has 2 TensorCores: add a leading parallel axis splitting the pixel
    # tiles so a single (or odd) batch still feeds both cores.
    nsplit = 2 if (num_tiles >= 2 and num_tiles % 2 == 0) else 1
    tiles_per_split = num_tiles // nsplit

    # Fused difference weight: diff = x @ (W_s - W_t). One projection, not two.
    wd = (w_student - w_teacher).astype(jnp.float32)

    kernel = _make_distill_kernel(c, tile_r, chunk_r, tiles_per_split, s128,
                                  needs_mask)

    grid = (nsplit, n, tiles_per_split)
    partials = pl.pallas_call(
        kernel,
        out_shape=jax.ShapeDtypeStruct((nsplit, n, 2, chunk_r, _LANE),
                                       jnp.float32),
        grid=grid,
        in_specs=[
            # Tiny (C, C) weight lives in SMEM (scalar reads for the FMAs).
            pl.BlockSpec(memory_space=pltpu.MemorySpace.SMEM),
            # Streaming, double-buffered lane/sublane-dense activation tiles.
            pl.BlockSpec((None, c, tile_r, _LANE),
                         lambda sp, b, t: (b, 0, sp * tiles_per_split + t, 0)),
        ],
        # Tiny per-(split,batch) accumulator block, resident across the
        # "arbitrary" pixel-tile axis.
        out_specs=pl.BlockSpec((None, None, 2, chunk_r, _LANE),
                               lambda sp, b, t: (sp, b, 0, 0, 0)),
        compiler_params=pltpu.CompilerParams(
            dimension_semantics=("parallel", "parallel", "arbitrary"),
            vmem_limit_bytes=32 * 1024 * 1024,
        ),
    )(wd, x4)

    # Deferred cross-lane / cross-batch / cross-split reduction + normalization
    # (a few KiB; tiny epilogue).  Divisor is the true N*C*H*W: zero padding of
    # the pixel axis contributes 0 to both sum(d^2) and sum(|d|).
    denom = jnp.float32(n * c * s)
    mse = jnp.sum(partials[:, :, 0]) / denom
    l1 = jnp.sum(partials[:, :, 1]) / denom
    return mse, l1


# ----------------------------------------------------------------------------
# BaseDistillation (JAX / Pallas)
# ----------------------------------------------------------------------------
class BaseDistillationPallas:
    """JAX/Pallas re-implementation of davarocr BaseDistillation.

    The abstract forward_train is given a minimal deterministic concrete body
    (student/teacher 1x1 projections + L2/L1 distillation losses) so the
    forward / _parse_losses / train_step pipeline is fully exercised.
    """

    def __init__(self, channels=4):
        self.fp16_enabled = False
        # Base __init__ has no parameters; the synthetic distillation head
        # below is initialized deterministically in-script.
        key = jax.random.PRNGKey(42)
        k1, k2 = jax.random.split(key)
        self.w_student = 0.1 * jax.random.normal(k1, (channels, channels), jnp.float32)
        self.w_teacher = 0.1 * jax.random.normal(k2, (channels, channels), jnp.float32)

    # --------------------------------------------------------------- weights
    def init_weights(self, pretrained=None):
        if pretrained is not None:
            logging.getLogger().info('load model from: {}'.format(pretrained))

    # ------------------------------------------------------------------ train
    def forward_train(self, imgs, img_metas=None, **kwargs):
        mse, l1 = distill_losses_pallas(imgs, self.w_student, self.w_teacher)
        return OrderedDict(loss_distill_mse=mse, loss_distill_l1=l1)

    # ------------------------------------------------------------------- test
    def simple_test(self, img, img_metas=None, **kwargs):
        # TODO(synk): abstract in the base class; no concrete inference head to port.
        raise NotImplementedError

    def aug_test(self, imgs, img_metas, **kwargs):
        raise NotImplementedError

    def forward_test(self, imgs, img_metas, **kwargs):
        for var, name in [(imgs, 'imgs'), (img_metas, 'img_metas')]:
            if not isinstance(var, list):
                raise TypeError('{} must be a list, but got {}'.format(name, type(var)))
        num_augs = len(imgs)
        if num_augs != len(img_metas):
            raise ValueError('num of augmentations ({}) != num of image meta ({})'.format(
                len(imgs), len(img_metas)))
        imgs_per_gpu = imgs[0].shape[0]
        assert imgs_per_gpu == 1
        if num_augs == 1:
            return self.simple_test(imgs[0], img_metas[0], **kwargs)
        return self.aug_test(imgs, img_metas, **kwargs)

    # ---------------------------------------------------------------- forward
    def forward(self, img, img_metas=None, return_loss=True, **kwargs):
        if return_loss:
            return self.forward_train(img, img_metas, **kwargs)
        return self.forward_test(img, img_metas, **kwargs)

    __call__ = forward

    # ----------------------------------------------------------- parse losses
    def _parse_losses(self, losses):
        log_vars = OrderedDict()
        for loss_name, loss_value in losses.items():
            if isinstance(loss_value, (list, tuple)):
                log_vars[loss_name] = sum(jnp.mean(v) for v in loss_value)
            elif isinstance(loss_value, jnp.ndarray):
                log_vars[loss_name] = jnp.mean(loss_value)
            else:
                raise TypeError(f'{loss_name} is not a tensor or list of tensors')

        # total loss = sum of every log_var whose name contains 'loss'.
        # A handful of scalars: plain sum (a Pallas kernel here is pure overhead).
        loss = sum(v for k, v in log_vars.items() if 'loss' in k)
        log_vars['loss'] = loss

        # Single host transfer for logging (replaces per-value .item() syncs).
        # TODO(synk): torch.distributed all_reduce world-size averaging has no
        # single-device equivalent here.
        host_vals = jax.device_get(log_vars)
        log_vars = OrderedDict((k, float(v)) for k, v in host_vals.items())
        return loss, log_vars

    # --------------------------------------------------------------- steppers
    def train_step(self, data, optimizer=None):
        losses = self(**data)
        loss, log_vars = self._parse_losses(losses)
        return dict(loss=loss, log_vars=log_vars, num_samples=len(data['img']))

    def val_step(self, data, optimizer=None):
        losses = self(**data)
        loss, log_vars = self._parse_losses(losses)
        return dict(loss=loss, log_vars=log_vars, num_samples=len(data['img']))


# ----------------------------------------------------------------------------
# Plain-JAX reference (for verification)
# ----------------------------------------------------------------------------
def _reference_total_loss(img, w_s, w_t):
    n, c, h, w = img.shape
    x2d = jnp.transpose(img, (0, 2, 3, 1)).reshape(n * h * w, c).astype(jnp.float32)
    fs = jnp.dot(x2d, w_s, precision=jax.lax.Precision.HIGHEST)
    ft = jnp.dot(x2d, w_t, precision=jax.lax.Precision.HIGHEST)
    diff = fs - ft
    mse = jnp.mean(diff * diff)
    l1 = jnp.mean(jnp.abs(diff))
    return mse + l1


if __name__ == "__main__":
    key = jax.random.PRNGKey(0)
    img = jax.random.normal(key, (2, 4, 16, 16), dtype=jnp.float32)  # NCHW

    model = BaseDistillationPallas(channels=4)

    data = dict(img=img, img_metas=None, return_loss=True)
    outputs = model.train_step(data, optimizer=None)
    loss = jax.block_until_ready(outputs['loss'])

    ref = float(_reference_total_loss(img, model.w_student, model.w_teacher))
    got = float(loss)
    assert abs(got - ref) <= 1e-4 * max(1.0, abs(ref)), (got, ref)
    assert outputs['num_samples'] == 2
    assert 'loss' in outputs['log_vars']

    print("KERNEL_OK")
</pallas_src>

<mosaic_0001>
module attributes {stable_mosaic.version = 11 : i64} {
  func.func @kernel(%arg0: i32, %arg1: i32, %arg2: i32, %arg3: memref<4x4xf32, #tpu.memory_space<smem>>, %arg4: memref<1x4x2x128xf32, #tpu.memory_space<vmem>>, %arg5: memref<1x1x2x2x128xf32, #tpu.memory_space<vmem>>) attributes {dimension_semantics = [#tpu.dimension_semantics<parallel>, #tpu.dimension_semantics<parallel>, #tpu.dimension_semantics<arbitrary>], iteration_bounds = array<i64: 1, 2, 1>, scalar_prefetch = 0 : i64, scratch_operands = 0 : i64, tpu.core_type = #tpu.core_type<tc>, window_params = [{transform_indices = @transform_0, window_bounds = array<i64: 4, 4>}, {transform_indices = @transform_1, window_bounds = array<i64: 1, 4, 2, 128>}, {transform_indices = @transform_2, window_bounds = array<i64: 1, 1, 2, 2, 128>}]} {
    %c0_i32 = arith.constant 0 : i32
    %0 = arith.cmpi eq, %arg2, %c0_i32 : i32
    %1 = arith.extui %0 : i1 to i32
    %c0_i32_0 = arith.constant 0 : i32
    %2 = arith.cmpi ne, %1, %c0_i32_0 : i32
    scf.if %2 {
      %cst_62 = arith.constant 0.000000e+00 : f32
      %105 = vector.broadcast %cst_62 : f32 to vector<2x2x128xf32>
      %c0_63 = arith.constant 0 : index
      %c0_64 = arith.constant 0 : index
      %c0_65 = arith.constant 0 : index
      %c0_66 = arith.constant 0 : index
      %c0_67 = arith.constant 0 : index
      %106 = vector.load %arg5[%c0_63, %c0_64, %c0_65, %c0_66, %c0_67] : memref<1x1x2x2x128xf32, #tpu.memory_space<vmem>>, vector<1x1x2x2x128xf32>
      %107 = vector.shape_cast %106 : vector<1x1x2x2x128xf32> to vector<2x2x128xf32>
      %108 = vector.shape_cast %105 : vector<2x2x128xf32> to vector<1x1x2x2x128xf32>
      tpu.vector_store %arg5[%c0_63, %c0_64, %c0_65, %c0_66, %c0_67], %108 {strides = array<i32>} : memref<1x1x2x2x128xf32, #tpu.memory_space<vmem>>, vector<1x1x2x2x128xf32>,
    } else {
    }
    %cst = arith.constant 0.000000e+00 : f32
    %3 = vector.broadcast %cst : f32 to vector<2x128xf32>
    %c0_i32_1 = arith.constant 0 : i32
    %c2_i32 = arith.constant 2 : i32
    %4 = arith.muli %c0_i32_1, %c2_i32 : i32
    %c0 = arith.constant 0 : index
    %c0_2 = arith.constant 0 : index
    %5 = arith.index_cast %4 : i32 to index
    %c0_3 = arith.constant 0 : index
    %6 = vector.load %arg4[%c0, %c0_2, %5, %c0_3] : memref<1x4x2x128xf32, #tpu.memory_space<vmem>>, vector<1x1x2x128xf32>
    %7 = vector.shape_cast %6 : vector<1x1x2x128xf32> to vector<2x128xf32>
    %c0_4 = arith.constant 0 : index
    %c1 = arith.constant 1 : index
    %8 = arith.index_cast %4 : i32 to index
    %c0_5 = arith.constant 0 : index
    %9 = vector.load %arg4[%c0_4, %c1, %8, %c0_5] : memref<1x4x2x128xf32, #tpu.memory_space<vmem>>, vector<1x1x2x128xf32>
    %10 = vector.shape_cast %9 : vector<1x1x2x128xf32> to vector<2x128xf32>
    %c0_6 = arith.constant 0 : index
    %c2 = arith.constant 2 : index
    %11 = arith.index_cast %4 : i32 to index
    %c0_7 = arith.constant 0 : index
    %12 = vector.load %arg4[%c0_6, %c2, %11, %c0_7] : memref<1x4x2x128xf32, #tpu.memory_space<vmem>>, vector<1x1x2x128xf32>
    %13 = vector.shape_cast %12 : vector<1x1x2x128xf32> to vector<2x128xf32>
    %c0_8 = arith.constant 0 : index
    %c3 = arith.constant 3 : index
    %14 = arith.index_cast %4 : i32 to index
    %c0_9 = arith.constant 0 : index
    %15 = vector.load %arg4[%c0_8, %c3, %14, %c0_9] : memref<1x4x2x128xf32, #tpu.memory_space<vmem>>, vector<1x1x2x128xf32>
    %16 = vector.shape_cast %15 : vector<1x1x2x128xf32> to vector<2x128xf32>
    %c0_10 = arith.constant 0 : index
    %c0_11 = arith.constant 0 : index
    %17 = memref.load %arg3[%c0_10, %c0_11] : memref<4x4xf32, #tpu.memory_space<smem>>
    %18 = vector.broadcast %17 : f32 to vector<2x128xf32>
    %19 = arith.mulf %7, %18 : vector<2x128xf32>
    %c1_12 = arith.constant 1 : index
    %c0_13 = arith.constant 0 : index
    %20 = memref.load %arg3[%c1_12, %c0_13] : memref<4x4xf32, #tpu.memory_space<smem>>
    %21 = vector.broadcast %20 : f32 to vector<2x128xf32>
    %22 = arith.mulf %10, %21 : vector<2x128xf32>
    %23 = arith.addf %19, %22 : vector<2x128xf32>
    %c2_14 = arith.constant 2 : index
    %c0_15 = arith.constant 0 : index
    %24 = memref.load %arg3[%c2_14, %c0_15] : memref<4x4xf32, #tpu.memory_space<smem>>
    %25 = vector.broadcast %24 : f32 to vector<2x128xf32>
    %26 = arith.mulf %13, %25 : vector<2x128xf32>
    %27 = arith.addf %23, %26 : vector<2x128xf32>
    %c3_16 = arith.constant 3 : index
    %c0_17 = arith.constant 0 : index
    %28 = memref.load %arg3[%c3_16, %c0_17] : memref<4x4xf32, #tpu.memory_space<smem>>
    %29 = vector.broadcast %28 : f32 to vector<2x128xf32>
    %30 = arith.mulf %16, %29 : vector<2x128xf32>
    %31 = arith.addf %27, %30 : vector<2x128xf32>
    %32 = arith.mulf %31, %31 : vector<2x128xf32>
    %33 = math.absf %31 : vector<2x128xf32>
    %34 = arith.addf %3, %32 : vector<2x128xf32>
    %35 = arith.addf %3, %33 : vector<2x128xf32>
    %c0_18 = arith.constant 0 : index
    %c1_19 = arith.constant 1 : index
    %36 = memref.load %arg3[%c0_18, %c1_19] : memref<4x4xf32, #tpu.memory_space<smem>>
    %37 = vector.broadcast %36 : f32 to vector<2x128xf32>
    %38 = arith.mulf %7, %37 : vector<2x128xf32>
    %c1_20 = arith.constant 1 : index
    %c1_21 = arith.constant 1 : index
    %39 = memref.load %arg3[%c1_20, %c1_21] : memref<4x4xf32, #tpu.memory_space<smem>>
    %40 = vector.broadcast %39 : f32 to vector<2x128xf32>
    %41 = arith.mulf %10, %40 : vector<2x128xf32>
    %42 = arith.addf %38, %41 : vector<2x128xf32>
    %c2_22 = arith.constant 2 : index
    %c1_23 = arith.constant 1 : index
    %43 = memref.load %arg3[%c2_22, %c1_23] : memref<4x4xf32, #tpu.memory_space<smem>>
    %44 = vector.broadcast %43 : f32 to vector<2x128xf32>
    %45 = arith.mulf %13, %44 : vector<2x128xf32>
    %46 = arith.addf %42, %45 : vector<2x128xf32>
    %c3_24 = arith.constant 3 : index
    %c1_25 = arith.constant 1 : index
    %47 = memref.load %arg3[%c3_24, %c1_25] : memref<4x4xf32, #tpu.memory_space<smem>>
    %48 = vector.broadcast %47 : f32 to vector<2x128xf32>
    %49 = arith.mulf %16, %48 : vector<2x128xf32>
    %50 = arith.addf %46, %49 : vector<2x128xf32>
    %51 = arith.mulf %50, %50 : vector<2x128xf32>
    %52 = math.absf %50 : vector<2x128xf32>
    %53 = arith.addf %34, %51 : vector<2x128xf32>
    %54 = arith.addf %35, %52 : vector<2x128xf32>
    %c0_26 = arith.constant 0 : index
    %c2_27 = arith.constant 2 : index
    %55 = memref.load %arg3[%c0_26, %c2_27] : memref<4x4xf32, #tpu.memory_space<smem>>
    %56 = vector.broadcast %55 : f32 to vector<2x128xf32>
    %57 = arith.mulf %7, %56 : vector<2x128xf32>
    %c1_28 = arith.constant 1 : index
    %c2_29 = arith.constant 2 : index
    %58 = memref.load %arg3[%c1_28, %c2_29] : memref<4x4xf32, #tpu.memory_space<smem>>
    %59 = vector.broadcast %58 : f32 to vector<2x128xf32>
    %60 = arith.mulf %10, %59 : vector<2x128xf32>
    %61 = arith.addf %57, %60 : vector<2x128xf32>
    %c2_30 = arith.constant 2 : index
    %c2_31 = arith.constant 2 : index
    %62 = memref.load %arg3[%c2_30, %c2_31] : memref<4x4xf32, #tpu.memory_space<smem>>
    %63 = vector.broadcast %62 : f32 to vector<2x128xf32>
    %64 = arith.mulf %13, %63 : vector<2x128xf32>
    %65 = arith.addf %61, %64 : vector<2x128xf32>
    %c3_32 = arith.constant 3 : index
    %c2_33 = arith.constant 2 : index
    %66 = memref.load %arg3[%c3_32, %c2_33] : memref<4x4xf32, #tpu.memory_space<smem>>
    %67 = vector.broadcast %66 : f32 to vector<2x128xf32>
    %68 = arith.mulf %16, %67 : vector<2x128xf32>
    %69 = arith.addf %65, %68 : vector<2x128xf32>
    %70 = arith.mulf %69, %69 : vector<2x128xf32>
    %71 = math.absf %69 : vector<2x128xf32>
    %72 = arith.addf %53, %70 : vector<2x128xf32>
    %73 = arith.addf %54, %71 : vector<2x128xf32>
    %c0_34 = arith.constant 0 : index
    %c3_35 = arith.constant 3 : index
    %74 = memref.load %arg3[%c0_34, %c3_35] : memref<4x4xf32, #tpu.memory_space<smem>>
    %75 = vector.broadcast %74 : f32 to vector<2x128xf32>
    %76 = arith.mulf %7, %75 : vector<2x128xf32>
    %c1_36 = arith.constant 1 : index
    %c3_37 = arith.constant 3 : index
    %77 = memref.load %arg3[%c1_36, %c3_37] : memref<4x4xf32, #tpu.memory_space<smem>>
    %78 = vector.broadcast %77 : f32 to vector<2x128xf32>
    %79 = arith.mulf %10, %78 : vector<2x128xf32>
    %80 = arith.addf %76, %79 : vector<2x128xf32>
    %c2_38 = arith.constant 2 : index
    %c3_39 = arith.constant 3 : index
    %81 = memref.load %arg3[%c2_38, %c3_39] : memref<4x4xf32, #tpu.memory_space<smem>>
    %82 = vector.broadcast %81 : f32 to vector<2x128xf32>
    %83 = arith.mulf %13, %82 : vector<2x128xf32>
    %84 = arith.addf %80, %83 : vector<2x128xf32>
    %c3_40 = arith.constant 3 : index
    %c3_41 = arith.constant 3 : index
    %85 = memref.load %arg3[%c3_40, %c3_41] : memref<4x4xf32, #tpu.memory_space<smem>>
    %86 = vector.broadcast %85 : f32 to vector<2x128xf32>
    %87 = arith.mulf %16, %86 : vector<2x128xf32>
    %88 = arith.addf %84, %87 : vector<2x128xf32>
    %89 = arith.mulf %88, %88 : vector<2x128xf32>
    %90 = math.absf %88 : vector<2x128xf32>
    %91 = arith.addf %72, %89 : vector<2x128xf32>
    %92 = arith.addf %73, %90 : vector<2x128xf32>
    %c1_i32 = arith.constant 1 : i32
    %c0_42 = arith.constant 0 : index
    %c0_43 = arith.constant 0 : index
    %c0_44 = arith.constant 0 : index
    %c0_45 = arith.constant 0 : index
    %c0_46 = arith.constant 0 : index
    %93 = vector.load %arg5[%c0_42, %c0_43, %c0_44, %c0_45, %c0_46] : memref<1x1x2x2x128xf32, #tpu.memory_space<vmem>>, vector<1x1x1x2x128xf32>
    %94 = vector.shape_cast %93 : vector<1x1x1x2x128xf32> to vector<2x128xf32>
    %95 = arith.addf %94, %91 : vector<2x128xf32>
    %c0_47 = arith.constant 0 : index
    %c0_48 = arith.constant 0 : index
    %c0_49 = arith.constant 0 : index
    %c0_50 = arith.constant 0 : index
    %c0_51 = arith.constant 0 : index
    %96 = vector.load %arg5[%c0_47, %c0_48, %c0_49, %c0_50, %c0_51] : memref<1x1x2x2x128xf32, #tpu.memory_space<vmem>>, vector<1x1x1x2x128xf32>
    %97 = vector.shape_cast %96 : vector<1x1x1x2x128xf32> to vector<2x128xf32>
    %98 = vector.shape_cast %95 : vector<2x128xf32> to vector<1x1x1x2x128xf32>
    tpu.vector_store %arg5[%c0_47, %c0_48, %c0_49, %c0_50, %c0_51], %98 {strides = array<i32>} : memref<1x1x2x2x128xf32, #tpu.memory_space<vmem>>, vector<1x1x1x2x128xf32>,
    %c0_52 = arith.constant 0 : index
    %c0_53 = arith.constant 0 : index
    %c1_54 = arith.constant 1 : index
    %c0_55 = arith.constant 0 : index
    %c0_56 = arith.constant 0 : index
    %99 = vector.load %arg5[%c0_52, %c0_53, %c1_54, %c0_55, %c0_56] : memref<1x1x2x2x128xf32, #tpu.memory_space<vmem>>, vector<1x1x1x2x128xf32>
    %100 = vector.shape_cast %99 : vector<1x1x1x2x128xf32> to vector<2x128xf32>
    %101 = arith.addf %100, %92 : vector<2x128xf32>
    %c0_57 = arith.constant 0 : index
    %c0_58 = arith.constant 0 : index
    %c1_59 = arith.constant 1 : index
    %c0_60 = arith.constant 0 : index
    %c0_61 = arith.constant 0 : index
    %102 = vector.load %arg5[%c0_57, %c0_58, %c1_59, %c0_60, %c0_61] : memref<1x1x2x2x128xf32, #tpu.memory_space<vmem>>, vector<1x1x1x2x128xf32>
    %103 = vector.shape_cast %102 : vector<1x1x1x2x128xf32> to vector<2x128xf32>
    %104 = vector.shape_cast %101 : vector<2x128xf32> to vector<1x1x1x2x128xf32>
    tpu.vector_store %arg5[%c0_57, %c0_58, %c1_59, %c0_60, %c0_61], %104 {strides = array<i32>} : memref<1x1x2x2x128xf32, #tpu.memory_space<vmem>>, vector<1x1x1x2x128xf32>,
    return
  }
  func.func @transform_0(%arg0: i32, %arg1: i32, %arg2: i32) -> (i32, i32) {
    %c0_i32 = arith.constant 0 : i32
    %c0_i32_0 = arith.constant 0 : i32
    %c0_i32_1 = arith.constant 0 : i32
    return %c0_i32, %c0_i32_0 : i32, i32
  }
  func.func @transform_1(%arg0: i32, %arg1: i32, %arg2: i32) -> (i32, i32, i32, i32) {
    %c1_i32 = arith.constant 1 : i32
    %0 = arith.muli %arg0, %c1_i32 : i32
    %1 = arith.addi %0, %arg2 : i32
    %c0_i32 = arith.constant 0 : i32
    %c0_i32_0 = arith.constant 0 : i32
    %c0_i32_1 = arith.constant 0 : i32
    return %arg1, %c0_i32, %1, %c0_i32_0 : i32, i32, i32, i32
  }
  func.func @transform_2(%arg0: i32, %arg1: i32, %arg2: i32) -> (i32, i32, i32, i32, i32) {
    %c0_i32 = arith.constant 0 : i32
    %c0_i32_0 = arith.constant 0 : i32
    %c0_i32_1 = arith.constant 0 : i32
    %c0_i32_2 = arith.constant 0 : i32
    return %arg0, %arg1, %c0_i32, %c0_i32_0, %c0_i32_1 : i32, i32, i32, i32, i32
  }
}

</mosaic_0001>

<llo_original>
// kernel: tpu_custom_call.1
$region0: #{tpu_custom_call.1}
  #allocation0 [shape = 'u32[]', space=smem, size = 0x4, offset = 0x4, fixed_abs, tag = 'smem constant byte address 0x4 - core index']
  #allocation1 [shape = 'u32[144,128]{1,0:T(1,128)}', space=vmem, size = 0x12000, scoped, tag = 'internal scratch']
  %s0 = inlined_call_operand.hbm [shape: f32[4,4], index: 0, kind: input, shape index: {}]
  %s1 = inlined_call_operand.hbm [shape: f32[2,4,2,128], index: 1, kind: input, shape index: {}]
  %s2 = inlined_call_operand.hbm [shape: f32[1,2,2,2,128], index: 2, kind: output, shape index: {}]
  %s3 = sld [smem:[#allocation0]]
  $region53: #{tpu_custom_call.1} parent=0
    _
  %s5 = ssub.s32 1, %s3
  %s6 = scalar_select 0, %s5, %s3
  $region1: #{tpu_custom_call.1} parent=0
    #allocation2 [shape = 'u8[2048]{0}', space=smem, size = 0x800, scoped, tag = 'input window, operand 0, single buffered']
    #allocation3 [shape = 's32[2]{0}', space=sflag, size = 0x8, scoped, tag = 'scoped memory for tpu_custom_call.1']
    #allocation4 [shape = 's32[2]{0}', space=sflag, size = 0x8, scoped, tag = 'scoped memory for tpu_custom_call.1']
    #allocation5 [shape = 's32[2]{0}', space=sflag, size = 0x8, scoped, tag = 'scoped memory for tpu_custom_call.1']
    #allocation6 [shape = 'u8[8192]{0}', space=vmem, size = 0x2000, scoped, tag = 'input window, operand 1']
    #allocation7 [shape = 'u8[4096]{0}', space=vmem, size = 0x1000, scoped, tag = 'output window, operand 0']
    %7 = vsyncpa [#allocation5], 0
    %8 = vsyncpa [#allocation3], 0
    %s9 = scalar_lea.sflag [#allocation3], 1
    %10 = vsyncpa %s9, 0
    %11 = vsyncpa [#allocation4], 0
    %s12 = scalar_lea.sflag [#allocation4], 1
    %13 = vsyncpa %s12, 0
    loop: start=0, step=1, limit=4
    $region2: #{tpu_custom_call.1} parent=1 // loop_pre_header
      _
    $region3: #{tpu_custom_call.1} parent=1 // loop_header
      %s15 = sphi 0, %s19
      %p16 = scmp.ge.s32.totalorder %s15, 4
      %s22 = sphi 0, %s41
      %s23 = sphi 0, %s37
      %s24 = sphi 0, %s33
      %s25 = sphi 0, %s22
      %s26 = sphi 0, %s23
      %s27 = sphi 0, %s24
      %s28 = sphi 0, %s25
      %s29 = sphi 0, %s26
      %s30 = sphi 0, %s27
      %s42 = sphi 0, %s42
      %s44 = sphi 0, %s42
      %s45 = sphi 0, %s44
      %s59 = sphi 0, %s45
      %s69 = sphi 0, %s71
      %s72 = sphi 0, %s69
      %s73 = sphi 0, %s72
      %s89 = sphi 0, %s73
      %s97 = sphi 0, %s99
      %s100 = sphi 0, %s97
      %s101 = sphi 0, %s100
      %s117 = sphi 0, %s101
    $region4: #{tpu_custom_call.1} parent=1 // loop_header_branch
      %18 = sbr.rel (%p16) target = $region8
    $region5: #{tpu_custom_call.1} parent=1 // loop_body
      %s20 = ssub.s32 %s15, 1
      %s21 = ssub.s32 %s15, 2
      %s31 = sadd.s32 1, %s24
      %p32 = scmp.ge.s32.totalorder %s31, 1
      %s33 = scalar_select %p32, 0, %s31
      %s34 = sadd.s32 1, %s23
      %s35 = scalar_select %p32, %s34, %s23
      %p36 = scmp.ge.s32.totalorder %s35, 2
      %s37 = scalar_select %p36, 0, %s35
      %s38 = sadd.s32 1, %s22
      %s39 = scalar_select %p36, %s38, %s22
      %p40 = scmp.ge.s32.totalorder %s39, 1
      %s41 = scalar_select %p40, 0, %s39
      %s43 = sadd.s32 %s42, 1
      %p46 = scmp.eq.s32.totalorder %s15, 1
      %p47 = scmp.ne.s32.totalorder %s42, %s44
      %p48 = scmp.eq.s32.totalorder %s15, 0
      %p49 = por %p47, %p48
      %p50 = scmp.ne.s32.totalorder %s42, %s44
      %p51 = scmp.eq.s32.totalorder %s20, 1
      %p52 = por %p50, %p51
      %p53 = scmp.ne.s32.totalorder %s44, %s45
      %p54 = scmp.eq.s32.totalorder %s20, 0
      %p55 = por %p53, %p54
      %p56 = scmp.ne.s32.totalorder %s44, %s45
      %p57 = scmp.eq.s32.totalorder %s21, 1
      %p58 = por %p56, %p57
      %p60 = scmp.ne.s32.totalorder %s45, %s59
      %p61 = scmp.eq.s32.totalorder %s21, 0
      %p62 = por %p60, %p61
      %s63 = sadd.s32 %s22, %s24
      %s64 = sadd.s32 %s41, %s33
      %s65 = ssub.s32 %s23, %s37
      %s66 = ssub.s32 %s63, %s64
      %s67 = sor.u32 %s65, %s66
      %p68 = scmp.eq.s32.totalorder %s67, 0
      %s70 = sadd.s32 %s69, 1
      %s71 = scalar_select %p68, %s69, %s70
      %p74 = pneg %p68
      %p75 = scmp.eq.s32.totalorder %s15, 1
      %p76 = por %p74, %p75
      %p77 = scmp.ne.s32.totalorder %s69, %s72
      %p78 = scmp.eq.s32.totalorder %s15, 0
      %p79 = por %p77, %p78
      %p80 = scmp.ne.s32.totalorder %s69, %s72
      %p81 = scmp.eq.s32.totalorder %s20, 1
      %p82 = por %p80, %p81
      %p83 = scmp.ne.s32.totalorder %s72, %s73
      %p84 = scmp.eq.s32.totalorder %s20, 0
      %p85 = por %p83, %p84
      %p86 = scmp.ne.s32.totalorder %s72, %s73
      %p87 = scmp.eq.s32.totalorder %s21, 1
      %p88 = por %p86, %p87
      %p90 = scmp.ne.s32.totalorder %s73, %s89
      %p91 = scmp.eq.s32.totalorder %s21, 0
      %p92 = por %p90, %p91
      %s93 = ssub.s32 %s22, %s41
      %s94 = ssub.s32 %s23, %s37
      %s95 = sor.u32 %s93, %s94
      %p96 = scmp.eq.s32.totalorder %s95, 0
      %s98 = sadd.s32 %s97, 1
      %s99 = scalar_select %p96, %s97, %s98
      %p102 = pneg %p96
      %p103 = scmp.eq.s32.totalorder %s15, 1
      %p104 = por %p102, %p103
      %p105 = scmp.ne.s32.totalorder %s97, %s100
      %p106 = scmp.eq.s32.totalorder %s15, 0
      %p107 = por %p105, %p106
      %p108 = scmp.ne.s32.totalorder %s97, %s100
      %p109 = scmp.eq.s32.totalorder %s20, 1
      %p110 = por %p108, %p109
      %p111 = scmp.ne.s32.totalorder %s100, %s101
      %p112 = scmp.eq.s32.totalorder %s20, 0
      %p113 = por %p111, %p112
      %p114 = scmp.ne.s32.totalorder %s100, %s101
      %p115 = scmp.eq.s32.totalorder %s21, 1
      %p116 = por %p114, %p115
      %p118 = scmp.ne.s32.totalorder %s101, %s117
      %p119 = scmp.eq.s32.totalorder %s21, 0
      %p120 = por %p118, %p119
      %p121 = scmp.le.s32.totalorder 1, %s15
      %p122 = scmp.lt.s32.totalorder %s15, 3
      %p123 = pnand %p121, %p122
      %p124 = pneg %p123
      // Predicated region
      $region9: #{tpu_custom_call.1} parent=5 // pred_check
        _
      $region10: #{tpu_custom_call.1} parent=5 // pred_check_branch
        %126 = sbr.rel (%p123) target = $region12
      $region11: #{tpu_custom_call.1} parent=5 // pred_region
        %s127 = ssub.s32 %s15, 1
        // Predicated region
        $region13: #{tpu_custom_call.1} parent=11 // pred_check
          %p128 = pneg %p55
        $region14: #{tpu_custom_call.1} parent=11 // pred_check_branch
          %130 = sbr.rel (%p128) target = $region16
        $region15: #{tpu_custom_call.1} parent=11 // pred_region
          %s132 = ssub.s32 64, 64
          %133 = vsyncadd [#allocation5], %s132
          %136 = dma.hbm_to_smem %s0, 64, [#allocation2], [#allocation5]
        $region16: #{tpu_custom_call.1} parent=11 // pred_fallthru
          _
      $region12: #{tpu_custom_call.1} parent=5 // pred_fallthru
        _
      %p137 = scmp.lt.s32.totalorder %s15, 2
      // Predicated region
      $region17: #{tpu_custom_call.1} parent=5 // pred_check
        %p138 = pneg %p137
      $region18: #{tpu_custom_call.1} parent=5 // pred_check_branch
        %140 = sbr.rel (%p138) target = $region20
      $region19: #{tpu_custom_call.1} parent=5 // pred_region
        // Predicated region
        $region21: #{tpu_custom_call.1} parent=19 // pred_check
          %p141 = pneg %p79
        $region22: #{tpu_custom_call.1} parent=19 // pred_check_branch
          %143 = sbr.rel (%p141) target = $region24
        $region23: #{tpu_custom_call.1} parent=19 // pred_region
          %s144 = sand.u32 %s69, 1
          %s145 = scalar_lea.sflag [#allocation3], %s144
          %s146 = sand.u32 %s69, 1
          %s147 = smul.addr %s146, 8
          %s148 = scalar_lea.vmem [#allocation6], %s147
          %s149 = sadd.s32 %s22, %s24
          %s151 = ssub.s32 128, 128
          %152 = vsyncadd %s145, %s151
          %s153 = smul.addr %s23, 4
          %s154 = sadd.s32 %s149, %s153
          %s155 = smul.addr %s154, 32
          %s156 = scalar_lea.hbm %s1, %s155
          %s157 = sshll.u32 %s148, 4
          %s158 = int_to_ptr.vmem [resolvable:$true] %s157
          %163 = dma.hbm_to_vmem [thread:$0]  %s156, 128, %s158, %s145, 32, 32, 2
        $region24: #{tpu_custom_call.1} parent=19 // pred_fallthru
          _
      $region20: #{tpu_custom_call.1} parent=5 // pred_fallthru
        _
      %p164 = scmp.le.s32.totalorder 1, %s15
      %p165 = scmp.lt.s32.totalorder %s15, 3
      %p166 = pnand %p164, %p165
      %p167 = pneg %p166
      // Predicated region
      $region25: #{tpu_custom_call.1} parent=5 // pred_check
        _
      $region26: #{tpu_custom_call.1} parent=5 // pred_check_branch
        %169 = sbr.rel (%p166) target = $region28
      $region27: #{tpu_custom_call.1} parent=5 // pred_region
        %s170 = ssub.s32 %s15, 1
        // Predicated region
        $region29: #{tpu_custom_call.1} parent=27 // pred_check
          %p171 = pneg %p55
        $region30: #{tpu_custom_call.1} parent=27 // pred_check_branch
          %173 = sbr.rel (%p171) target = $region32
        $region31: #{tpu_custom_call.1} parent=27 // pred_region
          %174 = dma.done [#allocation5], 64
        $region32: #{tpu_custom_call.1} parent=27 // pred_fallthru
          _
        %s175 = sand.u32 %s72, 1
        %s176 = scalar_lea.sflag [#allocation3], %s175
        %s177 = sand.u32 %s72, 1
        %s178 = smul.addr %s177, 8
        %s179 = scalar_lea.vmem [#allocation6], %s178
        // Predicated region
        $region33: #{tpu_custom_call.1} parent=27 // pred_check
          %p180 = pneg %p85
        $region34: #{tpu_custom_call.1} parent=27 // pred_check_branch
          %182 = sbr.rel (%p180) target = $region36
        $region35: #{tpu_custom_call.1} parent=27 // pred_region
          %183 = dma.done %s176, 128
        $region36: #{tpu_custom_call.1} parent=27 // pred_fallthru
          _
        %184 = sfence
        %p185 = pneg %p55
        %p186 = pneg %p52
        %s187 = sand.u32 %s72, 1
        %s188 = scalar_lea.sflag [#allocation3], %s187
        %s189 = sand.u32 %s72, 1
        %s190 = smul.addr %s189, 8
        %s191 = scalar_lea.vmem [#allocation6], %s190
        %p192 = pneg %p85
        %p193 = pneg %p82
        %p194 = pneg %p113
        %p195 = pneg %p110
        %s196 = sand.u32 %s100, 1
        %s197 = scalar_lea.sflag [#allocation4], %s196
        %s198 = sand.u32 %s100, 1
        %s199 = smul.addr %s198, 4
        %s200 = scalar_lea.vmem [#allocation7], %s199
        %s201 = sadd.s32 %s25, %s27
        %p202 = scmp.eq.s32.totalorder %s27, 0
        // Predicated region
        $region37: #{tpu_custom_call.1} parent=27 // pred_check
          %p203 = pneg %p202
        $region38: #{tpu_custom_call.1} parent=27 // pred_check_branch
          %205 = sbr.rel (%p203) target = $region40
        $region39: #{tpu_custom_call.1} parent=27 // pred_region
          %206 = vst [vmem:[%s200] sm:$0x3] 0.0
          %207 = vst [vmem:[%s200 + $0x2] sm:$0x3] 0.0
        $region40: #{tpu_custom_call.1} parent=27 // pred_fallthru
          _
        %v208 = vld [vmem:[%s179] sm:$0x3]
        %s209 = scalar_lea.vmem %s179, 2 [#allocation6]
        %v210 = vld [vmem:[%s209] sm:$0x3]
        %s211 = scalar_lea.vmem %s179, 4 [#allocation6]
        %v212 = vld [vmem:[%s211] sm:$0x3]
        %s213 = scalar_lea.vmem %s179, 6 [#allocation6]
        %v214 = vld [vmem:[%s213] sm:$0x3]
        %s215 = sld [smem:[#allocation2]]
        %v216 = vstv %s215
        %v217 = vmul.f32 %v208, %v216
        %s218 = sld [smem:[#allocation2 + $0x80]]
        %v219 = vstv %s218
        %v220 = vmul.f32 %v210, %v219
        %v221 = vadd.f32 %v217, %v220
        %s222 = sld [smem:[#allocation2 + $0x100]]
        %v223 = vstv %s222
        %v224 = vmul.f32 %v212, %v223
        %v225 = vadd.f32 %v221, %v224
        %s226 = sld [smem:[#allocation2 + $0x180]]
        %v227 = vstv %s226
        %v228 = vmul.f32 %v214, %v227
        %v229 = vadd.f32 %v225, %v228
        %v230 = vmul.f32 %v229, %v229
        %v231 = vand.u32 2147483647, %v229
        %v232 = vadd.f32 %v230, 0.0
        %v233 = vadd.f32 %v231, 0.0
        %s234 = sld [smem:[#allocation2 + $0x1]]
        %v235 = vstv %s234
        %v236 = vmul.f32 %v208, %v235
        %s237 = sld [smem:[#allocation2 + $0x81]]
        %v238 = vstv %s237
        %v239 = vmul.f32 %v210, %v238
        %v240 = vadd.f32 %v236, %v239
        %s241 = sld [smem:[#allocation2 + $0x101]]
        %v242 = vstv %s241
        %v243 = vmul.f32 %v212, %v242
        %v244 = vadd.f32 %v240, %v243
        %s245 = sld [smem:[#allocation2 + $0x181]]
        %v246 = vstv %s245
        %v247 = vmul.f32 %v214, %v246
        %v248 = vadd.f32 %v244, %v247
        %v249 = vmul.f32 %v248, %v248
        %v250 = vand.u32 2147483647, %v248
        %v251 = vadd.f32 %v232, %v249
        %v252 = vadd.f32 %v233, %v250
        %s253 = sld [smem:[#allocation2 + $0x2]]
        %v254 = vstv %s253
        %v255 = vmul.f32 %v208, %v254
        %s256 = sld [smem:[#allocation2 + $0x82]]
        %v257 = vstv %s256
        %v258 = vmul.f32 %v210, %v257
        %v259 = vadd.f32 %v255, %v258
        %s260 = sld [smem:[#allocation2 + $0x102]]
        %v261 = vstv %s260
        %v262 = vmul.f32 %v212, %v261
        %v263 = vadd.f32 %v259, %v262
        %s264 = sld [smem:[#allocation2 + $0x182]]
        %v265 = vstv %s264
        %v266 = vmul.f32 %v214, %v265
        %v267 = vadd.f32 %v263, %v266
        %v268 = vmul.f32 %v267, %v267
        %v269 = vand.u32 2147483647, %v267
        %v270 = vadd.f32 %v251, %v268
        %v271 = vadd.f32 %v252, %v269
        %s272 = sld [smem:[#allocation2 + $0x3]]
        %v273 = vstv %s272
        %v274 = vmul.f32 %v208, %v273
        %s275 = sld [smem:[#allocation2 + $0x83]]
        %v276 = vstv %s275
        %v277 = vmul.f32 %v210, %v276
        %v278 = vadd.f32 %v274, %v277
        %s279 = sld [smem:[#allocation2 + $0x103]]
        %v280 = vstv %s279
        %v281 = vmul.f32 %v212, %v280
        %v282 = vadd.f32 %v278, %v281
        %s283 = sld [smem:[#allocation2 + $0x183]]
        %v284 = vstv %s283
        %v285 = vmul.f32 %v214, %v284
        %v286 = vadd.f32 %v282, %v285
        %v287 = vmul.f32 %v286, %v286
        %v288 = vand.u32 2147483647, %v286
        %v289 = vadd.f32 %v270, %v287
        %v290 = vadd.f32 %v271, %v288
        %v291 = vld [vmem:[%s200] sm:$0x3]
        %v292 = vadd.f32 %v291, %v289
        %293 = vst [vmem:[%s200] sm:$0x3] %v292
        %s294 = scalar_lea.vmem %s200, 2 [#allocation7]
        %v295 = vld [vmem:[%s294] sm:$0x3]
        %v296 = vadd.f32 %v295, %v290
        %297 = vst [vmem:[%s294] sm:$0x3] %v296
        %s298 = sand.u32 %s100, 1
        %s299 = scalar_lea.sflag [#allocation4], %s298
        %s300 = sand.u32 %s100, 1
        %s301 = smul.addr %s300, 4
        %s302 = scalar_lea.vmem [#allocation7], %s301
        // Predicated region
        $region41: #{tpu_custom_call.1} parent=27 // pred_check
          %p303 = pneg %p110
        $region42: #{tpu_custom_call.1} parent=27 // pred_check_branch
          %305 = sbr.rel (%p303) target = $region44
        $region43: #{tpu_custom_call.1} parent=27 // pred_region
          %s307 = ssub.s32 64, 64
          %308 = vsyncadd %s299, %s307
          %s309 = smul.addr %s26, 2
          %s310 = smul.addr %s25, 4
          %s311 = sadd.s32 %s309, %s310
          %s312 = smul.addr %s311, 32
          %s313 = scalar_lea.hbm %s2, %s312
          %s314 = sshll.u32 %s302, 4
          %s315 = int_to_ptr.vmem [resolvable:$true] %s314
          %320 = dma.vmem_to_hbm [thread:$0]  %s315, 64, %s313, %s299, 32, 32, 2
        $region44: #{tpu_custom_call.1} parent=27 // pred_fallthru
          _
      $region28: #{tpu_custom_call.1} parent=5 // pred_fallthru
        _
      %p321 = scmp.le.s32.totalorder 2, %s15
      // Predicated region
      $region45: #{tpu_custom_call.1} parent=5 // pred_check
        %p322 = pneg %p321
      $region46: #{tpu_custom_call.1} parent=5 // pred_check_branch
        %324 = sbr.rel (%p322) target = $region48
      $region47: #{tpu_custom_call.1} parent=5 // pred_region
        %s325 = ssub.s32 %s15, 2
        // Predicated region
        $region49: #{tpu_custom_call.1} parent=47 // pred_check
          %p326 = pneg %p116
        $region50: #{tpu_custom_call.1} parent=47 // pred_check_branch
          %328 = sbr.rel (%p326) target = $region52
        $region51: #{tpu_custom_call.1} parent=47 // pred_region
          %s329 = sand.u32 %s101, 1
          %s330 = scalar_lea.sflag [#allocation4], %s329
          %s331 = sand.u32 %s101, 1
          %s332 = smul.addr %s331, 4
          %s333 = scalar_lea.vmem [#allocation7], %s332
          %334 = dma.done %s330, 64
        $region52: #{tpu_custom_call.1} parent=47 // pred_fallthru
          _
      $region48: #{tpu_custom_call.1} parent=5 // pred_fallthru
        _
    $region6: #{tpu_custom_call.1} parent=1 // loop_footer
      %s19 = sadd.s32 1, %s15
    $region7: #{tpu_custom_call.1} parent=1 // loop_footer_branch
      %14 = sbr.rel target = $region3
    $region8: #{tpu_custom_call.1} parent=1 // loop_exit
      _
    %335 = vsyncpa [#allocation3], 1
    %s336 = scalar_lea.sflag [#allocation3], 1
    %337 = vsyncpa %s336, 1
    %338 = vsyncpa [#allocation4], 1
    %s339 = scalar_lea.sflag [#allocation4], 1
    %340 = vsyncpa %s339, 1
    %341 = vsyncpa [#allocation5], 1
    %s342 = scalar_lea.sflag [#allocation5], 1
    %343 = vsyncpa %s342, 1

</llo_original>
